<compile_context>
chip_gen: v6e
topology: v6e:2x2x1
jax: 0.10.0
libtpu: 0.0.40
codegen_flags: <defaults>
</compile_context>

<pallas_src>
import jax
import jax.numpy as jnp
from jax import lax
from jax.experimental import pallas as pl
from jax.experimental.pallas import tpu as pltpu


def _gtp_kernel_masked(x_ref, w_ref, b_ref, m_ref, o_ref):
    # x_ref : (Bt, L, D)   text features for Bt batches
    # w_ref : (D, D)       W_txt.weight in PyTorch (out, in) layout
    # b_ref : (1, D)       W_txt.bias
    # m_ref : (Bt, L, Dm)  mask (Dm == 1 per-token, or Dm == D); 0 => masked
    # o_ref : (Bt, D)      pooled output
    Bt, L, D = x_ref.shape
    x = x_ref[...].astype(jnp.float32)                 # (Bt, L, D)
    w = w_ref[...].astype(jnp.float32)                 # (D, D)  (out, in)
    b = b_ref[...].astype(jnp.float32)                 # (1, D)

    # Linear layer: one big (Bt*L, D) x (D, D)^T matmul on the MXU.
    x2 = x.reshape(Bt * L, D)
    logits = lax.dot_general(
        x2, w, (((1,), (1,)), ((), ())),
        preferred_element_type=jnp.float32) + b        # (Bt*L, D)
    logits = logits.reshape(Bt, L, D)

    # masked_fill(mask == 0, -1e9); mask compared at its narrow width and
    # broadcast across the feature dim by jnp.where.
    keep = m_ref[...] != 0                             # (Bt, L, Dm) bool
    logits = jnp.where(keep, logits, jnp.float32(-1e9))

    # Softmax over the sequence axis (PyTorch dim=1); normalization deferred.
    mx = jnp.max(logits, axis=1, keepdims=True)        # (Bt, 1, D)
    e = jnp.exp(logits - mx)                           # (Bt, L, D)
    denom = jnp.sum(e, axis=1, keepdims=True)          # (Bt, 1, D)
    num = jnp.sum(x * e, axis=1, keepdims=True)        # (Bt, 1, D)
    out = num * pl.reciprocal(denom, approx=True)      # (Bt, 1, D)
    o_ref[...] = out.reshape(Bt, D).astype(o_ref.dtype)


def _gtp_kernel_nomask(x_ref, w_ref, b_ref, o_ref):
    # Same as above, without the mask stream.
    Bt, L, D = x_ref.shape
    x = x_ref[...].astype(jnp.float32)                 # (Bt, L, D)
    w = w_ref[...].astype(jnp.float32)
    b = b_ref[...].astype(jnp.float32)

    x2 = x.reshape(Bt * L, D)
    logits = lax.dot_general(
        x2, w, (((1,), (1,)), ((), ())),
        preferred_element_type=jnp.float32) + b        # (Bt*L, D)
    logits = logits.reshape(Bt, L, D)

    mx = jnp.max(logits, axis=1, keepdims=True)        # (Bt, 1, D)
    e = jnp.exp(logits - mx)                           # (Bt, L, D)
    denom = jnp.sum(e, axis=1, keepdims=True)          # (Bt, 1, D)
    num = jnp.sum(x * e, axis=1, keepdims=True)        # (Bt, 1, D)
    out = num * pl.reciprocal(denom, approx=True)      # (Bt, 1, D)
    o_ref[...] = out.reshape(Bt, D).astype(o_ref.dtype)


def _choose_block_b(B, L, D, itemsize=4, vmem_budget_bytes=8 * 1024 * 1024):
    """Largest batch tile Bt that (a) divides B, (b) keeps the output block
    sublane-legal (Bt == B or Bt % 8 == 0), and (c) keeps the double-buffered
    fea_text block comfortably inside scoped VMEM (v7x has only 64 MiB)."""
    best = None
    for bt in range(1, B + 1):
        if B % bt != 0:
            continue
        if bt != B and bt % 8 != 0:
            continue
        # fea_text block + fp32 intermediates (logits / e), double buffered.
        if 4 * bt * L * D * itemsize <= vmem_budget_bytes:
            best = bt
    if best is None:
        best = B  # fall back to a single full-batch block
    return best


def global_text_presentation(fea_text, weight, bias, mask=None, block_b=None):
    """fea_text: (B, L, D); weight: (D, D) PyTorch (out, in) layout;
    bias: (D,); mask: optional (B, L), (B, L, 1) or (B, L, D); 0 => masked."""
    B, L, D = fea_text.shape
    Bt = _choose_block_b(B, L, D, fea_text.dtype.itemsize) if block_b is None else block_b
    assert B % Bt == 0 and (Bt == B or Bt % 8 == 0)
    grid = (B // Bt,)

    b2 = bias.reshape(1, D)

    flops = 2 * B * L * D * D
    transcendentals = B * L * D
    bytes_accessed = (fea_text.size + weight.size + b2.size + B * D) * 4

    common_in_specs = [
        pl.BlockSpec((Bt, L, D), lambda i: (i, 0, 0)),   # fea_text
        pl.BlockSpec((D, D), lambda i: (0, 0)),          # weight (out, in)
        pl.BlockSpec((1, D), lambda i: (0, 0)),          # bias
    ]
    out_spec = pl.BlockSpec((Bt, D), lambda i: (i, 0))
    cparams = pltpu.CompilerParams(dimension_semantics=("parallel",))

    if mask is None:
        cost = pl.CostEstimate(flops=flops, transcendentals=transcendentals,
                               bytes_accessed=bytes_accessed)
        return pl.pallas_call(
            _gtp_kernel_nomask,
            out_shape=jax.ShapeDtypeStruct((B, D), fea_text.dtype),
            grid_spec=pltpu.PrefetchScalarGridSpec(
                num_scalar_prefetch=0,
                grid=grid,
                in_specs=common_in_specs,
                out_specs=out_spec,
            ),
            compiler_params=cparams,
            cost_estimate=cost,
        )(fea_text, weight, b2)

    # Keep the mask at its narrowest natural width (per-token if possible);
    # never expand it to (B, L, D) on the host unless it already is.
    if mask.ndim == 2:
        mask = mask.reshape(B, L, 1)
    Dm = mask.shape[-1]
    mask = mask.astype(fea_text.dtype)

    cost = pl.CostEstimate(flops=flops, transcendentals=transcendentals,
                           bytes_accessed=bytes_accessed + mask.size * 4)
    return pl.pallas_call(
        _gtp_kernel_masked,
        out_shape=jax.ShapeDtypeStruct((B, D), fea_text.dtype),
        grid_spec=pltpu.PrefetchScalarGridSpec(
            num_scalar_prefetch=0,
            grid=grid,
            in_specs=common_in_specs + [
                pl.BlockSpec((Bt, L, Dm), lambda i: (i, 0, 0)),   # mask
            ],
            out_specs=out_spec,
        ),
        compiler_params=cparams,
        cost_estimate=cost,
    )(fea_text, weight, b2, mask)


def _reference(fea_text, weight, bias, mask=None):
    # Pure-JAX reference mirroring the PyTorch forward.
    logits = jnp.einsum("bld,od->blo", fea_text, weight) + bias
    if mask is not None:
        m = mask
        if m.ndim == 2:
            m = m[..., None]
        logits = jnp.where(jnp.broadcast_to(m, logits.shape) == 0, -1e9, logits)
    p = jax.nn.softmax(logits, axis=1)
    return jnp.sum(fea_text * p, axis=1)


if __name__ == "__main__":
    key = jax.random.PRNGKey(0)
    B, L, D = 2, 8, 32          # batch, sequence length, text_dim

    k1, k2, k3 = jax.random.split(key, 3)
    fea_text = jax.random.normal(k1, (B, L, D), dtype=jnp.float32)
    weight = jax.random.normal(k2, (D, D), dtype=jnp.float32) * (1.0 / jnp.sqrt(D))
    bias = jax.random.normal(k3, (D,), dtype=jnp.float32) * 0.1
    # Per-token mask (like a (B, L, 1) PyTorch mask broadcast over features):
    # last two sequence positions of batch 1 are masked out.
    mask = jnp.ones((B, L, 1), dtype=jnp.float32)
    mask = mask.at[1, L - 2:, :].set(0.0)

    # Masked path.
    out = jax.block_until_ready(global_text_presentation(fea_text, weight, bias, mask))
    ref = _reference(fea_text, weight, bias, mask)
    assert out.shape == (B, D)
    assert jnp.allclose(out, ref, atol=2e-3, rtol=2e-3), (
        f"masked: max abs err = {jnp.max(jnp.abs(out - ref))}")

    # No-mask path (dedicated kernel variant, no mask DMA at all).
    out_nm = jax.block_until_ready(global_text_presentation(fea_text, weight, bias, None))
    ref_nm = _reference(fea_text, weight, bias, None)
    assert jnp.allclose(out_nm, ref_nm, atol=2e-3, rtol=2e-3), (
        f"no-mask: max abs err = {jnp.max(jnp.abs(out_nm - ref_nm))}")

    # Larger batch exercising the multi-batch-per-step grid (Bt=8, grid=(2,)).
    kb1, kb2 = jax.random.split(jax.random.PRNGKey(1), 2)
    Bb = 16
    fea_b = jax.random.normal(kb1, (Bb, L, D), dtype=jnp.float32)
    mask_b = (jax.random.uniform(kb2, (Bb, L, 1)) > 0.2).astype(jnp.float32)
    mask_b = mask_b.at[:, 0, :].set(1.0)   # keep at least one token per batch
    out_b = jax.block_until_ready(
        global_text_presentation(fea_b, weight, bias, mask_b, block_b=8))
    ref_b = _reference(fea_b, weight, bias, mask_b)
    assert jnp.allclose(out_b, ref_b, atol=2e-3, rtol=2e-3), (
        f"blocked: max abs err = {jnp.max(jnp.abs(out_b - ref_b))}")

    print("KERNEL_OK")
</pallas_src>

<mosaic_0001>
module attributes {stable_mosaic.version = 11 : i64} {
  func.func @_gtp_kernel_masked(%arg0: i32, %arg1: memref<2x8x32xf32, #tpu.memory_space<vmem>>, %arg2: memref<32x32xf32, #tpu.memory_space<vmem>>, %arg3: memref<1x32xf32, #tpu.memory_space<vmem>>, %arg4: memref<2x8x1xf32, #tpu.memory_space<vmem>>, %arg5: memref<2x32xf32, #tpu.memory_space<vmem>>) attributes {dimension_semantics = [#tpu.dimension_semantics<parallel>], iteration_bounds = array<i64: 1>, scalar_prefetch = 0 : i64, scratch_operands = 0 : i64, tpu.core_type = #tpu.core_type<tc>, window_params = [{transform_indices = @transform_0, window_bounds = array<i64: 2, 8, 32>}, {pipeline_mode = #tpu.pipeline_mode<synchronous>, transform_indices = @transform_1, window_bounds = array<i64: 32, 32>}, {pipeline_mode = #tpu.pipeline_mode<synchronous>, transform_indices = @transform_2, window_bounds = array<i64: 1, 32>}, {transform_indices = @transform_3, window_bounds = array<i64: 2, 8, 1>}, {transform_indices = @transform_4, window_bounds = array<i64: 2, 32>}]} {
    %c0 = arith.constant 0 : index
    %c0_0 = arith.constant 0 : index
    %c0_1 = arith.constant 0 : index
    %0 = vector.load %arg1[%c0, %c0_0, %c0_1] : memref<2x8x32xf32, #tpu.memory_space<vmem>>, vector<2x8x32xf32>
    %c0_2 = arith.constant 0 : index
    %c0_3 = arith.constant 0 : index
    %1 = vector.load %arg2[%c0_2, %c0_3] : memref<32x32xf32, #tpu.memory_space<vmem>>, vector<32x32xf32>
    %c0_4 = arith.constant 0 : index
    %c0_5 = arith.constant 0 : index
    %2 = vector.load %arg3[%c0_4, %c0_5] : memref<1x32xf32, #tpu.memory_space<vmem>>, vector<1x32xf32>
    %3 = vector.shape_cast %0 : vector<2x8x32xf32> to vector<16x32xf32>
    %cst = arith.constant dense<0.000000e+00> : vector<16x32xf32>
    %4 = tpu.matmul %3, %1, %cst {dimension_numbers = #tpu.dot_dimension_numbers<[1], [1], [0], [0], [0, 0, 1, 0], [], []>} : vector<16x32xf32>, vector<32x32xf32>, vector<16x32xf32> -> vector<16x32xf32>
    %5 = vector.broadcast %2 : vector<1x32xf32> to vector<16x32xf32>
    %6 = arith.addf %4, %5 : vector<16x32xf32>
    %7 = vector.shape_cast %6 : vector<16x32xf32> to vector<2x8x32xf32>
    %c0_6 = arith.constant 0 : index
    %c0_7 = arith.constant 0 : index
    %c0_8 = arith.constant 0 : index
    %8 = vector.load %arg4[%c0_6, %c0_7, %c0_8] : memref<2x8x1xf32, #tpu.memory_space<vmem>>, vector<2x8x1xf32>
    %cst_9 = arith.constant 0.000000e+00 : f32
    %9 = vector.broadcast %cst_9 : f32 to vector<2x8x1xf32>
    %10 = arith.cmpf one, %8, %9 : vector<2x8x1xf32>
    %cst_10 = arith.constant -1.000000e+09 : f32
    %11 = vector.shape_cast %10 : vector<2x8x1xi1> to vector<2x8x1xi1>
    %12 = vector.broadcast %11 : vector<2x8x1xi1> to vector<2x8x32xi1>
    %13 = vector.broadcast %cst_10 : f32 to vector<2x8x32xf32>
    %14 = arith.select %12, %7, %13 : vector<2x8x32xi1>, vector<2x8x32xf32>
    %cst_11 = arith.constant dense<0xFF800000> : vector<2x32xf32>
    %15 = vector.multi_reduction <maximumf>, %14, %cst_11 [1] : vector<2x8x32xf32> to vector<2x32xf32>
    %16 = vector.shape_cast %15 : vector<2x32xf32> to vector<2x1x32xf32>
    %17 = vector.broadcast %16 : vector<2x1x32xf32> to vector<2x8x32xf32>
    %18 = arith.subf %14, %17 : vector<2x8x32xf32>
    %19 = math.exp %18 : vector<2x8x32xf32>
    %cst_12 = arith.constant dense<0.000000e+00> : vector<2x32xf32>
    %20 = vector.multi_reduction <add>, %19, %cst_12 [1] : vector<2x8x32xf32> to vector<2x32xf32>
    %21 = vector.shape_cast %20 : vector<2x32xf32> to vector<2x1x32xf32>
    %22 = arith.mulf %0, %19 : vector<2x8x32xf32>
    %cst_13 = arith.constant dense<0.000000e+00> : vector<2x32xf32>
    %23 = vector.multi_reduction <add>, %22, %cst_13 [1] : vector<2x8x32xf32> to vector<2x32xf32>
    %24 = vector.shape_cast %23 : vector<2x32xf32> to vector<2x1x32xf32>
    %25 = tpu.reciprocal %21 {approx = true} : vector<2x1x32xf32> -> vector<2x1x32xf32>
    %26 = arith.mulf %24, %25 : vector<2x1x32xf32>
    %27 = vector.shape_cast %26 : vector<2x1x32xf32> to vector<2x32xf32>
    %c0_14 = arith.constant 0 : index
    %c0_15 = arith.constant 0 : index
    %28 = vector.load %arg5[%c0_14, %c0_15] : memref<2x32xf32, #tpu.memory_space<vmem>>, vector<2x32xf32>
    tpu.vector_store %arg5[%c0_14, %c0_15], %27 {strides = array<i32>} : memref<2x32xf32, #tpu.memory_space<vmem>>, vector<2x32xf32>,
    return
  }
  func.func @transform_0(%arg0: i32) -> (i32, i32, i32) {
    %c0_i32 = arith.constant 0 : i32
    %c0_i32_0 = arith.constant 0 : i32
    %c0_i32_1 = arith.constant 0 : i32
    return %arg0, %c0_i32, %c0_i32_0 : i32, i32, i32
  }
  func.func @transform_1(%arg0: i32) -> (i32, i32) {
    %c0_i32 = arith.constant 0 : i32
    %c0_i32_0 = arith.constant 0 : i32
    %c0_i32_1 = arith.constant 0 : i32
    return %c0_i32, %c0_i32_0 : i32, i32
  }
  func.func @transform_2(%arg0: i32) -> (i32, i32) {
    %c0_i32 = arith.constant 0 : i32
    %c0_i32_0 = arith.constant 0 : i32
    %c0_i32_1 = arith.constant 0 : i32
    return %c0_i32, %c0_i32_0 : i32, i32
  }
  func.func @transform_3(%arg0: i32) -> (i32, i32, i32) {
    %c0_i32 = arith.constant 0 : i32
    %c0_i32_0 = arith.constant 0 : i32
    %c0_i32_1 = arith.constant 0 : i32
    return %arg0, %c0_i32, %c0_i32_0 : i32, i32, i32
  }
  func.func @transform_4(%arg0: i32) -> (i32, i32) {
    %c0_i32 = arith.constant 0 : i32
    %c0_i32_0 = arith.constant 0 : i32
    return %arg0, %c0_i32 : i32, i32
  }
}

</mosaic_0001>

<llo_original>
// kernel: tpu_custom_call.1
$region0: #{tpu_custom_call.1}
  #allocation0 [shape = 'u32[]', space=smem, size = 0x4, offset = 0x4, fixed_abs, tag = 'smem constant byte address 0x4 - core index']
  #allocation1 [shape = 'u32[144,128]{1,0:T(1,128)}', space=vmem, size = 0x12000, scoped, tag = 'internal scratch']
  %s0 = inlined_call_operand.vmem [shape: f32[2,8,32], index: 0, kind: input, shape index: {}]
  %s1 = inlined_call_operand.hbm [shape: f32[32,32], index: 1, kind: input, shape index: {}]
  %s2 = inlined_call_operand.vmem [shape: f32[1,32], index: 2, kind: input, shape index: {}]
  %s3 = inlined_call_operand.vmem [shape: f32[2,8,1], index: 3, kind: input, shape index: {}]
  %s4 = inlined_call_operand.hbm [shape: f32[2,32], index: 4, kind: output, shape index: {}]
  %s5 = sld [smem:[#allocation0]]
  $region30: #{tpu_custom_call.1} parent=0
    _
  %s7 = ssub.s32 1, %s5
  %s8 = scalar_select 0, %s7, %s5
  $region1: #{tpu_custom_call.1} parent=0
    #allocation2 [shape = 'u8[16384]{0}', space=vmem, size = 0x4000, scoped, tag = 'input window, operand 1, single buffered']
    #allocation3 [shape = 's32[1]{0}', space=sflag, size = 0x4, scoped, tag = 'scoped memory for tpu_custom_call.1']
    #allocation4 [shape = 's32[1]{0}', space=sflag, size = 0x4, scoped, tag = 'scoped memory for tpu_custom_call.1']
    #allocation5 [shape = 'u8[1024]{0}', space=vmem, size = 0x400, scoped, tag = 'output window, operand 0, single buffered']
    %9 = vsyncpa [#allocation3], 0
    %10 = vsyncpa [#allocation4], 0
    // Predicated region
    $region2: #{tpu_custom_call.1} parent=1 // pred_check
      _
    $region3: #{tpu_custom_call.1} parent=1 // pred_check_branch
      %12 = sbr.rel (0) target = $region5
    $region4: #{tpu_custom_call.1} parent=1 // pred_region
      _
    $region5: #{tpu_custom_call.1} parent=1 // pred_fallthru
      _
    // Predicated region
    $region6: #{tpu_custom_call.1} parent=1 // pred_check
      _
    $region7: #{tpu_custom_call.1} parent=1 // pred_check_branch
      %14 = sbr.rel (0) target = $region9
    $region8: #{tpu_custom_call.1} parent=1 // pred_region
      %s16 = ssub.s32 512, 512
      %17 = vsyncadd [#allocation3], %s16
      %s18 = sshll.u32 [#allocation2], 4
      %s19 = int_to_ptr.vmem [resolvable:$true] %s18
      %24 = dma.hbm_to_vmem [thread:$0]  %s1, 512, %s19, [#allocation3], 128, 128, 8
    $region9: #{tpu_custom_call.1} parent=1 // pred_fallthru
      _
    // Predicated region
    $region10: #{tpu_custom_call.1} parent=1 // pred_check
      _
    $region11: #{tpu_custom_call.1} parent=1 // pred_check_branch
      %26 = sbr.rel (0) target = $region13
    $region12: #{tpu_custom_call.1} parent=1 // pred_region
      _
    $region13: #{tpu_custom_call.1} parent=1 // pred_fallthru
      _
    // Predicated region
    $region14: #{tpu_custom_call.1} parent=1 // pred_check
      _
    $region15: #{tpu_custom_call.1} parent=1 // pred_check_branch
      %28 = sbr.rel (0) target = $region17
    $region16: #{tpu_custom_call.1} parent=1 // pred_region
      _
    $region17: #{tpu_custom_call.1} parent=1 // pred_fallthru
      _
    // Predicated region
    $region18: #{tpu_custom_call.1} parent=1 // pred_check
      _
    $region19: #{tpu_custom_call.1} parent=1 // pred_check_branch
      %30 = sbr.rel (0) target = $region21
    $region20: #{tpu_custom_call.1} parent=1 // pred_region
      %31 = dma.done [#allocation3], 512
    $region21: #{tpu_custom_call.1} parent=1 // pred_fallthru
      _
    %v32 = vld [vmem:[%s0] sm:$0xff]
    %v33 = vld [vmem:[%s0 + $0x8] sm:$0xff]
    %v34 = vld [vmem:[#allocation2] sm:$0xff]
    %v35 = vld [vmem:[#allocation2 + $0x8] sm:$0xff]
    %v36 = vld [vmem:[#allocation2 + $0x10] sm:$0xff]
    %v37 = vld [vmem:[#allocation2 + $0x18] sm:$0xff]
    %v38 = vld [vmem:[%s2] sm:$0x1]
    %v40 = vlaneseq
    %v41 = vshrl.u32 %v40, 7
    %v42 = vsub.s32 0, %v41
    %v43 = vrot.slane %v38, %v42
    %vm45 = vcmask 261120
    %v47 = vsel %vm45, %v32, 0
    %v50 = vsel %vm45, %v33, 0
    %v53 = vsel %vm45, %v34, 0
    %v56 = vsel %vm45, %v35, 0
    %v59 = vsel %vm45, %v36, 0
    %v62 = vsel %vm45, %v37, 0
    %64 = vmatprep.subr.mxu0 0.0
    %65 = vmatpush1.xpose.msra.mxu0 0.0
    %66 = vmatprep.subr.mxu0 0.0
    %67 = vmatpush1.xpose.msra.mxu0 0.0
    %68 = vmatprep.subr.mxu0 0.0
    %69 = vmatpush1.xpose.msra.mxu0 0.0
    %70 = vmatprep.subr.mxu0 0.0
    %71 = vmatpush1.xpose.msra.mxu0 0.0
    %72 = vmatprep.subr.mxu0 0.0
    %73 = vmatpush1.xpose.msra.mxu0 0.0
    %74 = vmatprep.subr.mxu0 0.0
    %75 = vmatpush1.xpose.msra.mxu0 0.0
    %76 = vmatprep.subr.mxu0 0.0
    %77 = vmatpush1.xpose.msra.mxu0 0.0
    %78 = vmatprep.subr.mxu0 0.0
    %79 = vmatpush1.xpose.msra.mxu0 0.0
    %80 = vmatprep.subr.mxu0 0.0
    %81 = vmatpush1.xpose.msra.mxu0 0.0
    %82 = vmatprep.subr.mxu0 0.0
    %83 = vmatpush1.xpose.msra.mxu0 0.0
    %84 = vmatprep.subr.mxu0 0.0
    %85 = vmatpush1.xpose.msra.mxu0 0.0
    %86 = vmatprep.subr.mxu0 0.0
    %87 = vmatpush1.xpose.msra.mxu0 0.0
    %88 = vmatprep.subr.mxu0 0.0
    %89 = vmatpush1.xpose.msra.mxu0 %v62
    %90 = vmatprep.subr.mxu0 0.0
    %91 = vmatpush1.xpose.msra.mxu0 %v59
    %92 = vmatprep.subr.mxu0 0.0
    %93 = vmatpush1.xpose.msra.mxu0 %v56
    %94 = vmatprep.subr.mxu0 0.0
    %95 = vmatpush1.xpose.msra.mxu0 %v53
    %96 = vmatprep.subr.mxu0 0.0
    %97 = vmatpush2.xpose.msra.mxu0 0.0
    %98 = vmatprep.subr.mxu0 0.0
    %99 = vmatpush2.xpose.msra.mxu0 0.0
    %100 = vmatprep.subr.mxu0 0.0
    %101 = vmatpush2.xpose.msra.mxu0 0.0
    %102 = vmatprep.subr.mxu0 0.0
    %103 = vmatpush2.xpose.msra.mxu0 0.0
    %104 = vmatprep.subr.mxu0 0.0
    %105 = vmatpush2.xpose.msra.mxu0 0.0
    %106 = vmatprep.subr.mxu0 0.0
    %107 = vmatpush2.xpose.msra.mxu0 0.0
    %108 = vmatprep.subr.mxu0 0.0
    %109 = vmatpush2.xpose.msra.mxu0 0.0
    %110 = vmatprep.subr.mxu0 0.0
    %111 = vmatpush2.xpose.msra.mxu0 0.0
    %112 = vmatprep.subr.mxu0 0.0
    %113 = vmatpush2.xpose.msra.mxu0 0.0
    %114 = vmatprep.subr.mxu0 0.0
    %115 = vmatpush2.xpose.msra.mxu0 0.0
    %116 = vmatprep.subr.mxu0 0.0
    %117 = vmatpush2.xpose.msra.mxu0 0.0
    %118 = vmatprep.subr.mxu0 0.0
    %119 = vmatpush2.xpose.msra.mxu0 0.0
    %120 = vmatprep.subr.mxu0 0.0
    %121 = vmatpush2.xpose.msra.mxu0 0.0
    %122 = vmatprep.subr.mxu0 0.0
    %123 = vmatpush2.xpose.msra.mxu0 0.0
    %124 = vmatprep.subr.mxu0 0.0
    %125 = vmatpush2.xpose.msra.mxu0 0.0
    %126 = vmatprep.subr.mxu0 0.0
    %127 = vmatpush2.xpose.msra.mxu0 0.0
    %128 = vmatprep.mubr.f32.mxu0 0.0
    %129 = vmatmul.mubr.f32.gmra.mxu0 %v47
    %v130 = vpop.f32.mrf.mxu0
    %v131 = vadd.f32 %v43, %v130
    %v132 = vpop.f32.mrf.mxu0
    %133 = vmatprep.mubr.f32.mxu0 0.0
    %134 = vmatmul.mubr.f32.gmra.mxu0 %v50
    %v135 = vpop.f32.mrf.mxu0
    %v136 = vadd.f32 %v43, %v135
    %v137 = vpop.f32.mrf.mxu0
    %138 = vdwg.mxu0
    %v139 = vld [vmem:[%s3] sm:$0xff]
    %v140 = vld [vmem:[%s3 + $0x8] sm:$0xff]
    %vm141 = vcmp.ne.f32.partialorder %v139, 0.0
    %vm142 = vcmp.ne.f32.partialorder %v140, 0.0
    %v143 = vsel %vm141, 1, 0
    %v144 = vsel %vm142, 1, 0
    %145 = vset.pattern.permute.xlu0 0
    %146 = vperm.xlu0 %145, %v143
    %v147 = vpop.permute.xlu0 %146
    %148 = vset.pattern.permute.xlu0 0
    %149 = vperm.xlu0 %148, %v144
    %v150 = vpop.permute.xlu0 %149
    %vm151 = vcmp.eq.s32.totalorder %v147, 1
    %vm152 = vcmp.eq.s32.totalorder %v150, 1
    %v153 = vsel %vm151, %v131, -1e+09
    %v154 = vsel %vm152, %v136, -1e+09
    %v155 = vsel %vm45, %v153, -inf
    %v156 = vrot.slane %v155, 4
    %v157 = vmax.f32 %v155, %v156
    %v158 = vrot.slane %v157, 2
    %v159 = vmax.f32 %v157, %v158
    %v160 = vrot.slane %v159, 1
    %v161 = vmax.f32 %v159, %v160
    %v162 = vsel %vm45, %v154, -inf
    %v163 = vrot.slane %v162, 4
    %v164 = vmax.f32 %v162, %v163
    %v165 = vrot.slane %v164, 2
    %v166 = vmax.f32 %v164, %v165
    %v167 = vrot.slane %v166, 1
    %v168 = vmax.f32 %v166, %v167
    %v169 = vsub.f32 %v153, %v161
    %v170 = vsub.f32 %v154, %v168
    %v171 = vmul.f32 %v169, 1.442695
    %v172 = vpow.pop %v171
    %v173 = vmul.f32 %v170, 1.442695
    %v174 = vpow.pop %v173
    %v175 = vsel %vm45, %v172, 0.0
    %v176 = vrot.slane %v175, 4
    %v177 = vadd.f32 %v175, %v176
    %v178 = vrot.slane %v177, 2
    %v179 = vadd.f32 %v177, %v178
    %v180 = vrot.slane %v179, 1
    %v181 = vadd.f32 %v179, %v180
    %v182 = vsel %vm45, %v174, 0.0
    %v183 = vrot.slane %v182, 4
    %v184 = vadd.f32 %v182, %v183
    %v185 = vrot.slane %v184, 2
    %v186 = vadd.f32 %v184, %v185
    %v187 = vrot.slane %v186, 1
    %v188 = vadd.f32 %v186, %v187
    %v189 = vmul.f32 %v32, %v172
    %v190 = vmul.f32 %v33, %v174
    %v191 = vsel %vm45, %v189, 0.0
    %v192 = vrot.slane %v191, 4
    %v193 = vadd.f32 %v191, %v192
    %v194 = vrot.slane %v193, 2
    %v195 = vadd.f32 %v193, %v194
    %v196 = vrot.slane %v195, 1
    %v197 = vadd.f32 %v195, %v196
    %v198 = vsel %vm45, %v190, 0.0
    %v199 = vrot.slane %v198, 4
    %v200 = vadd.f32 %v198, %v199
    %v201 = vrot.slane %v200, 2
    %v202 = vadd.f32 %v200, %v201
    %v203 = vrot.slane %v202, 1
    %v204 = vadd.f32 %v202, %v203
    %v205 = vrcp.pop %v181
    %v206 = vrcp.pop %v188
    %v207 = vmul.f32 %v197, %v205
    %v208 = vmul.f32 %v204, %v206
    %vm211 = vcmask 1041409
    %v212 = vsel %vm211, %v208, %v207
    %vm214 = vcmask 254976
    %215 = vst.msk [vmem:[#allocation5] sm:$0x3] %vm214, %v212
    // Predicated region
    $region22: #{tpu_custom_call.1} parent=1 // pred_check
      _
    $region23: #{tpu_custom_call.1} parent=1 // pred_check_branch
      %217 = sbr.rel (0) target = $region25
    $region24: #{tpu_custom_call.1} parent=1 // pred_region
      %s219 = ssub.s32 32, 32
      %220 = vsyncadd [#allocation4], %s219
      %s222 = sshll.u32 [#allocation5], 4
      %s223 = int_to_ptr.vmem [resolvable:$true] %s222
      %225 = dma.vmem_to_hbm [thread:$0]  %s223, 32, %s4, [#allocation4]
    $region25: #{tpu_custom_call.1} parent=1 // pred_fallthru
      _
    // Predicated region
    $region26: #{tpu_custom_call.1} parent=1 // pred_check
      _
    $region27: #{tpu_custom_call.1} parent=1 // pred_check_branch
      %227 = sbr.rel (0) target = $region29
    $region28: #{tpu_custom_call.1} parent=1 // pred_region
      %228 = dma.done [#allocation4], 32
    $region29: #{tpu_custom_call.1} parent=1 // pred_fallthru
      _
    %229 = vsyncpa [#allocation3], 1
    %230 = vsyncpa [#allocation4], 1

</llo_original>
